<compile_context>
chip_gen: v7x
topology: tpu7x:2x2x1
jax: 0.10.0
libtpu: 0.0.40
codegen_flags: <defaults>
</compile_context>

<pallas_src>
import functools

import jax
import jax.numpy as jnp
from jax.experimental import pallas as pl
from jax.experimental.pallas import tpu as pltpu

_LANE = 128


def _round_up(n, m):
    return ((n + m - 1) // m) * m


def _choose_row_tile(rows_total, target_rows):
    """Pick the per-grid-step number of 128-wide batch rows.

    Aim for `target_rows` (~hundreds of KiB of x per DMA, well past the
    ~0.35us/step pipeline overhead), but keep >= 4 grid blocks for large
    batches so v7x's two TensorCores both get work and the pipeline can
    double-buffer; never shrink a tile below 64 rows (~96 KiB of x).
    """
    min_rows, min_blocks = 64, 4
    r = min(max(int(target_rows), 1), rows_total)
    if rows_total >= min_blocks * min_rows:
        r = min(r, pl.cdiv(rows_total, min_blocks))
        r = max(r, min_rows)
    if r < rows_total:
        # Non-full second-minor block dims must stay multiples of 8.
        r = max(8, (r // 8) * 8)
    return r


def _runit_kernel(x_ref, w1_ref, b1_ref, w2_ref, b2_ref, o_ref):
    # x_ref : VMEM [in_dim, R, 128]   one dense (8,128) slab per input feature
    # w1_ref: SMEM [mid_dim, in_dim]  b1_ref: SMEM [mid_dim]
    # w2_ref: SMEM [out_dim, mid_dim] b2_ref: SMEM [out_dim]
    # o_ref : VMEM [out_dim, R, 128]  dense (8,128) output slabs
    in_dim = x_ref.shape[0]
    mid_dim = b1_ref.shape[0]
    out_dim = o_ref.shape[0]

    xs = [x_ref[k].astype(jnp.float32) for k in range(in_dim)]

    # Hidden layer: tiny contraction (K = in_dim) -> VPU scalar*slab MACs, no MXU.
    hs = []
    for j in range(mid_dim):
        h = w1_ref[j, 0] * xs[0]
        for k in range(1, in_dim):
            h = h + w1_ref[j, k] * xs[k]
        hs.append(jnp.maximum(h + b1_ref[j], 0.0))  # ReLU in f32

    # Output layer: same trick over mid_dim.
    for m in range(out_dim):
        acc = w2_ref[m, 0] * hs[0]
        for j in range(1, mid_dim):
            acc = acc + w2_ref[m, j] * hs[j]
        o_ref[m] = (acc + b2_ref[m]).astype(o_ref.dtype)


@functools.partial(jax.jit, static_argnames=("block_batch",))
def runit_forward(x, w1, b1, w2, b2, *, block_batch=65536):
    """x: [B, in_dim]; w1: [mid, in]; b1: [mid]; w2: [out, mid]; b2: [out]
    (PyTorch nn.Linear layouts, used as-is). Returns [B, out_dim]."""
    B, in_dim = x.shape
    mid_dim = w1.shape[0]
    out_dim = w2.shape[0]

    # Pad batch only to the next 128-lane multiple (no tile-sized zero-fill).
    b_pad = _round_up(max(B, _LANE), _LANE)
    if b_pad != B:
        x = jnp.pad(x, ((0, b_pad - B), (0, 0)))
    rows = b_pad // _LANE

    # Feature-major dense slabs [in_dim, rows, 128]; allow_input_fusion lets XLA
    # fuse this transpose/reshape producer into the pallas input DMA.
    x_slabs = x.T.reshape(in_dim, rows, _LANE)

    r = _choose_row_tile(rows, block_batch // _LANE)
    grid = (pl.cdiv(rows, r),)

    smem = pl.BlockSpec(memory_space=pltpu.MemorySpace.SMEM)

    out3 = pl.pallas_call(
        _runit_kernel,
        out_shape=jax.ShapeDtypeStruct((out_dim, rows, _LANE), x.dtype),
        grid_spec=pltpu.PrefetchScalarGridSpec(
            num_scalar_prefetch=0,
            grid=grid,
            in_specs=[
                pl.BlockSpec((in_dim, r, _LANE), lambda i: (0, i, 0)),  # x slabs (streamed)
                smem,  # W1 (scalars in SMEM)
                smem,  # b1
                smem,  # W2
                smem,  # b2
            ],
            out_specs=pl.BlockSpec((out_dim, r, _LANE), lambda i: (0, i, 0)),
        ),
        compiler_params=pltpu.CompilerParams(
            dimension_semantics=("parallel",),  # shard batch tiles across TCs (v7x)
            allow_input_fusion=[True, False, False, False, False],
            vmem_limit_bytes=32 * 1024 * 1024,  # >> ~2 MiB actually used; fits all gens
        ),
    )(
        x_slabs,
        w1.astype(jnp.float32),
        b1.astype(jnp.float32),
        w2.astype(jnp.float32),
        b2.astype(jnp.float32),
    )

    out = out3.reshape(out_dim, b_pad)[:, :B]
    if out_dim == 1:
        return out.reshape(B, 1)  # free reshape, no output transpose
    return out.T


def _init_linear(key, out_dim, in_dim):
    # Deterministic init mimicking nn.Linear's uniform(-1/sqrt(in), 1/sqrt(in)).
    kw, kb = jax.random.split(key)
    bound = 1.0 / jnp.sqrt(jnp.float32(in_dim))
    w = jax.random.uniform(kw, (out_dim, in_dim), jnp.float32, -bound, bound)
    b = jax.random.uniform(kb, (out_dim,), jnp.float32, -bound, bound)
    return w, b


if __name__ == "__main__":
    in_dim, mid_dim, out_dim = 3, 3, 1

    key = jax.random.PRNGKey(0)
    kx, k1, k2, kx2 = jax.random.split(key, 4)

    w1, b1 = _init_linear(k1, mid_dim, in_dim)
    w2, b2 = _init_linear(k2, out_dim, mid_dim)

    def ref_fn(xx):
        return jnp.maximum(xx @ w1.T + b1, 0.0) @ w2.T + b2

    # Small lane-aligned batch (single grid block).
    batch = 1024
    x = jax.random.normal(kx, (batch, in_dim), jnp.float32)
    out = jax.block_until_ready(runit_forward(x, w1, b1, w2, b2))
    assert out.shape == (batch, out_dim)
    assert jnp.allclose(out, ref_fn(x), atol=1e-5, rtol=1e-5)

    # Ragged batch exercises the 128-lane padding + tail-slice path.
    batch_small = 200
    x_small = jax.random.normal(kx2, (batch_small, in_dim), jnp.float32)
    out_small = jax.block_until_ready(runit_forward(x_small, w1, b1, w2, b2))
    assert out_small.shape == (batch_small, out_dim)
    assert jnp.allclose(out_small, ref_fn(x_small), atol=1e-5, rtol=1e-5)

    print("KERNEL_OK")
</pallas_src>

<mosaic_0001>
module attributes {stable_mosaic.version = 11 : i64} {
  func.func @_runit_kernel(%arg0: i32, %arg1: memref<3x8x128xf32, #tpu.memory_space<vmem>>, %arg2: memref<3x3xf32, #tpu.memory_space<smem>>, %arg3: memref<3xf32, #tpu.memory_space<smem>>, %arg4: memref<1x3xf32, #tpu.memory_space<smem>>, %arg5: memref<1xf32, #tpu.memory_space<smem>>, %arg6: memref<1x8x128xf32, #tpu.memory_space<vmem>>) attributes {dimension_semantics = [#tpu.dimension_semantics<parallel>], iteration_bounds = array<i64: 1>, scalar_prefetch = 0 : i64, scratch_operands = 0 : i64, tpu.core_type = #tpu.core_type<tc>, window_params = [{transform_indices = @transform_0, window_bounds = array<i64: 3, 8, 128>}, {transform_indices = @transform_1, window_bounds = array<i64: 3, 3>}, {transform_indices = @transform_2, window_bounds = array<i64: 3>}, {transform_indices = @transform_3, window_bounds = array<i64: 1, 3>}, {transform_indices = @transform_4, window_bounds = array<i64: 1>}, {transform_indices = @transform_5, window_bounds = array<i64: 1, 8, 128>}]} {
    %c0 = arith.constant 0 : index
    %c0_0 = arith.constant 0 : index
    %c0_1 = arith.constant 0 : index
    %0 = vector.load %arg1[%c0, %c0_0, %c0_1] : memref<3x8x128xf32, #tpu.memory_space<vmem>>, vector<1x8x128xf32>
    %1 = vector.shape_cast %0 : vector<1x8x128xf32> to vector<8x128xf32>
    %c1 = arith.constant 1 : index
    %c0_2 = arith.constant 0 : index
    %c0_3 = arith.constant 0 : index
    %2 = vector.load %arg1[%c1, %c0_2, %c0_3] : memref<3x8x128xf32, #tpu.memory_space<vmem>>, vector<1x8x128xf32>
    %3 = vector.shape_cast %2 : vector<1x8x128xf32> to vector<8x128xf32>
    %c2 = arith.constant 2 : index
    %c0_4 = arith.constant 0 : index
    %c0_5 = arith.constant 0 : index
    %4 = vector.load %arg1[%c2, %c0_4, %c0_5] : memref<3x8x128xf32, #tpu.memory_space<vmem>>, vector<1x8x128xf32>
    %5 = vector.shape_cast %4 : vector<1x8x128xf32> to vector<8x128xf32>
    %c0_6 = arith.constant 0 : index
    %c0_7 = arith.constant 0 : index
    %6 = memref.load %arg2[%c0_6, %c0_7] : memref<3x3xf32, #tpu.memory_space<smem>>
    %7 = vector.broadcast %6 : f32 to vector<8x128xf32>
    %8 = arith.mulf %7, %1 : vector<8x128xf32>
    %c0_8 = arith.constant 0 : index
    %c1_9 = arith.constant 1 : index
    %9 = memref.load %arg2[%c0_8, %c1_9] : memref<3x3xf32, #tpu.memory_space<smem>>
    %10 = vector.broadcast %9 : f32 to vector<8x128xf32>
    %11 = arith.mulf %10, %3 : vector<8x128xf32>
    %12 = arith.addf %8, %11 : vector<8x128xf32>
    %c0_10 = arith.constant 0 : index
    %c2_11 = arith.constant 2 : index
    %13 = memref.load %arg2[%c0_10, %c2_11] : memref<3x3xf32, #tpu.memory_space<smem>>
    %14 = vector.broadcast %13 : f32 to vector<8x128xf32>
    %15 = arith.mulf %14, %5 : vector<8x128xf32>
    %16 = arith.addf %12, %15 : vector<8x128xf32>
    %c0_12 = arith.constant 0 : index
    %17 = memref.load %arg3[%c0_12] : memref<3xf32, #tpu.memory_space<smem>>
    %18 = vector.broadcast %17 : f32 to vector<8x128xf32>
    %19 = arith.addf %16, %18 : vector<8x128xf32>
    %cst = arith.constant 0.000000e+00 : f32
    %20 = vector.broadcast %cst : f32 to vector<8x128xf32>
    %21 = arith.maximumf %19, %20 : vector<8x128xf32>
    %c1_13 = arith.constant 1 : index
    %c0_14 = arith.constant 0 : index
    %22 = memref.load %arg2[%c1_13, %c0_14] : memref<3x3xf32, #tpu.memory_space<smem>>
    %23 = vector.broadcast %22 : f32 to vector<8x128xf32>
    %24 = arith.mulf %23, %1 : vector<8x128xf32>
    %c1_15 = arith.constant 1 : index
    %c1_16 = arith.constant 1 : index
    %25 = memref.load %arg2[%c1_15, %c1_16] : memref<3x3xf32, #tpu.memory_space<smem>>
    %26 = vector.broadcast %25 : f32 to vector<8x128xf32>
    %27 = arith.mulf %26, %3 : vector<8x128xf32>
    %28 = arith.addf %24, %27 : vector<8x128xf32>
    %c1_17 = arith.constant 1 : index
    %c2_18 = arith.constant 2 : index
    %29 = memref.load %arg2[%c1_17, %c2_18] : memref<3x3xf32, #tpu.memory_space<smem>>
    %30 = vector.broadcast %29 : f32 to vector<8x128xf32>
    %31 = arith.mulf %30, %5 : vector<8x128xf32>
    %32 = arith.addf %28, %31 : vector<8x128xf32>
    %c1_19 = arith.constant 1 : index
    %33 = memref.load %arg3[%c1_19] : memref<3xf32, #tpu.memory_space<smem>>
    %34 = vector.broadcast %33 : f32 to vector<8x128xf32>
    %35 = arith.addf %32, %34 : vector<8x128xf32>
    %cst_20 = arith.constant 0.000000e+00 : f32
    %36 = vector.broadcast %cst_20 : f32 to vector<8x128xf32>
    %37 = arith.maximumf %35, %36 : vector<8x128xf32>
    %c2_21 = arith.constant 2 : index
    %c0_22 = arith.constant 0 : index
    %38 = memref.load %arg2[%c2_21, %c0_22] : memref<3x3xf32, #tpu.memory_space<smem>>
    %39 = vector.broadcast %38 : f32 to vector<8x128xf32>
    %40 = arith.mulf %39, %1 : vector<8x128xf32>
    %c2_23 = arith.constant 2 : index
    %c1_24 = arith.constant 1 : index
    %41 = memref.load %arg2[%c2_23, %c1_24] : memref<3x3xf32, #tpu.memory_space<smem>>
    %42 = vector.broadcast %41 : f32 to vector<8x128xf32>
    %43 = arith.mulf %42, %3 : vector<8x128xf32>
    %44 = arith.addf %40, %43 : vector<8x128xf32>
    %c2_25 = arith.constant 2 : index
    %c2_26 = arith.constant 2 : index
    %45 = memref.load %arg2[%c2_25, %c2_26] : memref<3x3xf32, #tpu.memory_space<smem>>
    %46 = vector.broadcast %45 : f32 to vector<8x128xf32>
    %47 = arith.mulf %46, %5 : vector<8x128xf32>
    %48 = arith.addf %44, %47 : vector<8x128xf32>
    %c2_27 = arith.constant 2 : index
    %49 = memref.load %arg3[%c2_27] : memref<3xf32, #tpu.memory_space<smem>>
    %50 = vector.broadcast %49 : f32 to vector<8x128xf32>
    %51 = arith.addf %48, %50 : vector<8x128xf32>
    %cst_28 = arith.constant 0.000000e+00 : f32
    %52 = vector.broadcast %cst_28 : f32 to vector<8x128xf32>
    %53 = arith.maximumf %51, %52 : vector<8x128xf32>
    %c0_29 = arith.constant 0 : index
    %c0_30 = arith.constant 0 : index
    %54 = memref.load %arg4[%c0_29, %c0_30] : memref<1x3xf32, #tpu.memory_space<smem>>
    %55 = vector.broadcast %54 : f32 to vector<8x128xf32>
    %56 = arith.mulf %55, %21 : vector<8x128xf32>
    %c0_31 = arith.constant 0 : index
    %c1_32 = arith.constant 1 : index
    %57 = memref.load %arg4[%c0_31, %c1_32] : memref<1x3xf32, #tpu.memory_space<smem>>
    %58 = vector.broadcast %57 : f32 to vector<8x128xf32>
    %59 = arith.mulf %58, %37 : vector<8x128xf32>
    %60 = arith.addf %56, %59 : vector<8x128xf32>
    %c0_33 = arith.constant 0 : index
    %c2_34 = arith.constant 2 : index
    %61 = memref.load %arg4[%c0_33, %c2_34] : memref<1x3xf32, #tpu.memory_space<smem>>
    %62 = vector.broadcast %61 : f32 to vector<8x128xf32>
    %63 = arith.mulf %62, %53 : vector<8x128xf32>
    %64 = arith.addf %60, %63 : vector<8x128xf32>
    %c0_35 = arith.constant 0 : index
    %65 = memref.load %arg5[%c0_35] : memref<1xf32, #tpu.memory_space<smem>>
    %66 = vector.broadcast %65 : f32 to vector<8x128xf32>
    %67 = arith.addf %64, %66 : vector<8x128xf32>
    %c0_36 = arith.constant 0 : index
    %c0_37 = arith.constant 0 : index
    %c0_38 = arith.constant 0 : index
    %68 = vector.load %arg6[%c0_36, %c0_37, %c0_38] : memref<1x8x128xf32, #tpu.memory_space<vmem>>, vector<1x8x128xf32>
    %69 = vector.shape_cast %68 : vector<1x8x128xf32> to vector<8x128xf32>
    %70 = vector.shape_cast %67 : vector<8x128xf32> to vector<1x8x128xf32>
    tpu.vector_store %arg6[%c0_36, %c0_37, %c0_38], %70 {strides = array<i32>} : memref<1x8x128xf32, #tpu.memory_space<vmem>>, vector<1x8x128xf32>,
    return
  }
  func.func @transform_0(%arg0: i32) -> (i32, i32, i32) {
    %c0_i32 = arith.constant 0 : i32
    %c0_i32_0 = arith.constant 0 : i32
    %c0_i32_1 = arith.constant 0 : i32
    return %c0_i32, %arg0, %c0_i32_0 : i32, i32, i32
  }
  func.func @transform_1(%arg0: i32) -> (i32, i32) {
    %c0_i32 = arith.constant 0 : i32
    %c0_i32_0 = arith.constant 0 : i32
    %c0_i32_1 = arith.constant 0 : i32
    return %c0_i32, %c0_i32_0 : i32, i32
  }
  func.func @transform_2(%arg0: i32) -> i32 {
    %c0_i32 = arith.constant 0 : i32
    %c0_i32_0 = arith.constant 0 : i32
    return %c0_i32 : i32
  }
  func.func @transform_3(%arg0: i32) -> (i32, i32) {
    %c0_i32 = arith.constant 0 : i32
    %c0_i32_0 = arith.constant 0 : i32
    %c0_i32_1 = arith.constant 0 : i32
    return %c0_i32, %c0_i32_0 : i32, i32
  }
  func.func @transform_4(%arg0: i32) -> i32 {
    %c0_i32 = arith.constant 0 : i32
    %c0_i32_0 = arith.constant 0 : i32
    return %c0_i32 : i32
  }
  func.func @transform_5(%arg0: i32) -> (i32, i32, i32) {
    %c0_i32 = arith.constant 0 : i32
    %c0_i32_0 = arith.constant 0 : i32
    %c0_i32_1 = arith.constant 0 : i32
    return %c0_i32, %arg0, %c0_i32_0 : i32, i32, i32
  }
}

</mosaic_0001>

<llo_original>
// kernel: runit_forward.2
$region0: #{runit_forward.2}
  #allocation0 [shape = 'u32[]', space=smem, size = 0x4, offset = 0x4, fixed_abs, tag = 'smem constant byte address 0x4 - core index']
  #allocation1 [shape = 'u32[144,128]{1,0:T(1,128)}', space=vmem, size = 0x12000, scoped, tag = 'internal scratch']
  #allocation2 [shape = 'f32[1]{0:T(128)S(6)}', space=smem, size = 0x200, scoped, tag = 'scoped memory for runit_forward.2']
  %s0 = inlined_call_operand.vmem [shape: f32[3,3], index: 0, kind: input, shape index: {}]
  %s1 = inlined_call_operand.vmem [shape: f32[3], index: 1, kind: input, shape index: {}]
  %s2 = inlined_call_operand.vmem [shape: f32[1,3], index: 2, kind: input, shape index: {}]
  %s3 = inlined_call_operand.<no memory space> [shape: f32[1], index: 3, kind: input, shape index: {}]
  %s4 = inlined_call_operand.vmem [shape: f32[1,3,8,128], index: 4, kind: input, shape index: {}]
  %s5 = inlined_call_operand.hbm [shape: f32[1,8,128], index: 5, kind: output, shape index: {}]
  %s6 = sld [smem:[#allocation0]]
  $region42: #{runit_forward.2} parent=0
    _
  %s8 = ssub.s32 1, %s6
  %s9 = scalar_select 0, %s8, %s6
  %10 = sst [smem:[#allocation2]] %s3
  $region1: #{runit_forward.2} parent=0
    #allocation3 [shape = 'u8[2048]{0}', space=smem, size = 0x800, scoped, tag = 'input window, operand 1, single buffered']
    #allocation4 [shape = 's32[1]{0}', space=sflag, size = 0x4, scoped, tag = 'scoped memory for runit_forward.2']
    #allocation5 [shape = 's32[1]{0}', space=sflag, size = 0x4, scoped, tag = 'scoped memory for runit_forward.2']
    #allocation6 [shape = 'u8[512]{0}', space=smem, size = 0x200, scoped, tag = 'input window, operand 2, single buffered']
    #allocation7 [shape = 's32[1]{0}', space=sflag, size = 0x4, scoped, tag = 'scoped memory for runit_forward.2']
    #allocation8 [shape = 'u8[512]{0}', space=smem, size = 0x200, scoped, tag = 'input window, operand 3, single buffered']
    #allocation9 [shape = 'u8[4096]{0}', space=vmem, size = 0x1000, scoped, tag = 'output window, operand 0, single buffered']
    #allocation10 [shape = 'u8[12288]{0}', space=vmem, size = 0x3000, dematerialized = true, scoped, tag = 'FusionAdapter Buffer %fusion.1 = f32[3,8,128]{2,1,0:T(8,128)} fusion(%param_4.1), kind=kLoop, calls=%fused_computation.1.clone, metadata={op_name="jit(runit_forward)/reshape" stack_frame_id=7}']
    %11 = vsyncpa [#allocation5], 0
    %12 = vsyncpa [#allocation7], 0
    %13 = vsyncpa [#allocation4], 0
    // Predicated region
    $region2: #{runit_forward.2} parent=1 // pred_check
      _
    $region3: #{runit_forward.2} parent=1 // pred_check_branch
      %15 = sbr.rel (0) target = $region5
    $region4: #{runit_forward.2} parent=1 // pred_region
      _
    $region5: #{runit_forward.2} parent=1 // pred_fallthru
      _
    // Predicated region
    $region6: #{runit_forward.2} parent=1 // pred_check
      _
    $region7: #{runit_forward.2} parent=1 // pred_check_branch
      %17 = sbr.rel (0) target = $region9
    $region8: #{runit_forward.2} parent=1 // pred_region
      %s19 = ssub.s32 64, 64
      %20 = vsyncadd [#allocation5], %s19
      %s22 = sshll.u32 %s0, 4
      %s23 = int_to_ptr.vmem [resolvable:$true] %s22
      %25 = dma.vmem_to_smem %s23, 64, [#allocation3], [#allocation5]
    $region9: #{runit_forward.2} parent=1 // pred_fallthru
      _
    // Predicated region
    $region10: #{runit_forward.2} parent=1 // pred_check
      _
    $region11: #{runit_forward.2} parent=1 // pred_check_branch
      %27 = sbr.rel (0) target = $region13
    $region12: #{runit_forward.2} parent=1 // pred_region
      %s29 = ssub.s32 16, 16
      %30 = vsyncadd [#allocation7], %s29
      %s32 = sshll.u32 %s1, 4
      %s33 = int_to_ptr.vmem [resolvable:$true] %s32
      %35 = dma.vmem_to_smem %s33, 16, [#allocation6], [#allocation7]
    $region13: #{runit_forward.2} parent=1 // pred_fallthru
      _
    // Predicated region
    $region14: #{runit_forward.2} parent=1 // pred_check
      _
    $region15: #{runit_forward.2} parent=1 // pred_check_branch
      %37 = sbr.rel (0) target = $region17
    $region16: #{runit_forward.2} parent=1 // pred_region
      %s39 = ssub.s32 16, 16
      %40 = vsyncadd [#allocation7], %s39
      %s42 = sshll.u32 %s2, 4
      %s43 = int_to_ptr.vmem [resolvable:$true] %s42
      %45 = dma.vmem_to_smem %s43, 16, [#allocation8], [#allocation7]
    $region17: #{runit_forward.2} parent=1 // pred_fallthru
      _
    // Predicated region
    $region18: #{runit_forward.2} parent=1 // pred_check
      _
    $region19: #{runit_forward.2} parent=1 // pred_check_branch
      %47 = sbr.rel (0) target = $region21
    $region20: #{runit_forward.2} parent=1 // pred_region
      _
    $region21: #{runit_forward.2} parent=1 // pred_fallthru
      _
    // Predicated region
    $region22: #{runit_forward.2} parent=1 // pred_check
      _
    $region23: #{runit_forward.2} parent=1 // pred_check_branch
      %49 = sbr.rel (0) target = $region25
    $region24: #{runit_forward.2} parent=1 // pred_region
      %50 = dma.done [#allocation5], 64
    $region25: #{runit_forward.2} parent=1 // pred_fallthru
      _
    // Predicated region
    $region26: #{runit_forward.2} parent=1 // pred_check
      _
    $region27: #{runit_forward.2} parent=1 // pred_check_branch
      %52 = sbr.rel (0) target = $region29
    $region28: #{runit_forward.2} parent=1 // pred_region
      %53 = dma.done [#allocation7], 16
    $region29: #{runit_forward.2} parent=1 // pred_fallthru
      _
    // Predicated region
    $region30: #{runit_forward.2} parent=1 // pred_check
      _
    $region31: #{runit_forward.2} parent=1 // pred_check_branch
      %55 = sbr.rel (0) target = $region33
    $region32: #{runit_forward.2} parent=1 // pred_region
      %56 = dma.done [#allocation7], 16
    $region33: #{runit_forward.2} parent=1 // pred_fallthru
      _
    %57 = sfence
    %v58 = vld [vmem:[%s4] sm:$0xff]
    %60 = vst [vmem:[#allocation10] sm:$0xff] %v58
    %s61 = scalar_lea.vmem %s4, 8
    %v62 = vld [vmem:[%s61] sm:$0xff]
    %s63 = scalar_lea.vmem [#allocation10], 8
    %65 = vst [vmem:[%s63] sm:$0xff] %v62
    %s66 = scalar_lea.vmem %s4, 16
    %v67 = vld [vmem:[%s66] sm:$0xff]
    %s68 = scalar_lea.vmem [#allocation10], 16
    %70 = vst [vmem:[%s68] sm:$0xff] %v67
    %v71 = vld [vmem:[#allocation10] sm:$0xff]
    %s72 = scalar_lea.vmem [#allocation10], 8
    %v73 = vld [vmem:[%s72] sm:$0xff]
    %s74 = scalar_lea.vmem [#allocation10], 16
    %v75 = vld [vmem:[%s74] sm:$0xff]
    %s76 = sld [smem:[#allocation3]]
    %v77 = vstv %s76
    %v78 = vmul.f32 %v77, %v71
    %s79 = sld [smem:[#allocation3 + $0x1]]
    %v80 = vstv %s79
    %v81 = vmul.f32 %v80, %v73
    %v82 = vadd.f32 %v78, %v81
    %s83 = sld [smem:[#allocation3 + $0x2]]
    %v84 = vstv %s83
    %v85 = vmul.f32 %v84, %v75
    %v86 = vadd.f32 %v82, %v85
    %s87 = sld [smem:[#allocation6]]
    %v88 = vstv %s87
    %v89 = vadd.f32 %v86, %v88
    %v90 = vmax.f32 %v89, 0.0
    %s91 = sld [smem:[#allocation3 + $0x80]]
    %v92 = vstv %s91
    %v93 = vmul.f32 %v92, %v71
    %s94 = sld [smem:[#allocation3 + $0x81]]
    %v95 = vstv %s94
    %v96 = vmul.f32 %v95, %v73
    %v97 = vadd.f32 %v93, %v96
    %s98 = sld [smem:[#allocation3 + $0x82]]
    %v99 = vstv %s98
    %v100 = vmul.f32 %v99, %v75
    %v101 = vadd.f32 %v97, %v100
    %s102 = sld [smem:[#allocation6 + $0x1]]
    %v103 = vstv %s102
    %v104 = vadd.f32 %v101, %v103
    %v105 = vmax.f32 %v104, 0.0
    %s106 = sld [smem:[#allocation3 + $0x100]]
    %v107 = vstv %s106
    %v108 = vmul.f32 %v107, %v71
    %s109 = sld [smem:[#allocation3 + $0x101]]
    %v110 = vstv %s109
    %v111 = vmul.f32 %v110, %v73
    %v112 = vadd.f32 %v108, %v111
    %s113 = sld [smem:[#allocation3 + $0x102]]
    %v114 = vstv %s113
    %v115 = vmul.f32 %v114, %v75
    %v116 = vadd.f32 %v112, %v115
    %s117 = sld [smem:[#allocation6 + $0x2]]
    %v118 = vstv %s117
    %v119 = vadd.f32 %v116, %v118
    %v120 = vmax.f32 %v119, 0.0
    %s121 = sld [smem:[#allocation8]]
    %v122 = vstv %s121
    %v123 = vmul.f32 %v122, %v90
    %s124 = sld [smem:[#allocation8 + $0x1]]
    %v125 = vstv %s124
    %v126 = vmul.f32 %v125, %v105
    %v127 = vadd.f32 %v123, %v126
    %s128 = sld [smem:[#allocation8 + $0x2]]
    %v129 = vstv %s128
    %v130 = vmul.f32 %v129, %v120
    %v131 = vadd.f32 %v127, %v130
    %s132 = sld [smem:[#allocation2]]
    %v133 = vstv %s132
    %v134 = vadd.f32 %v131, %v133
    %135 = vst [vmem:[#allocation9] sm:$0xff] %v134
    // Predicated region
    $region34: #{runit_forward.2} parent=1 // pred_check
      _
    $region35: #{runit_forward.2} parent=1 // pred_check_branch
      %137 = sbr.rel (0) target = $region37
    $region36: #{runit_forward.2} parent=1 // pred_region
      %s139 = ssub.s32 128, 128
      %140 = vsyncadd [#allocation4], %s139
      %s142 = sshll.u32 [#allocation9], 4
      %s143 = int_to_ptr.vmem [resolvable:$true] %s142
      %145 = dma.vmem_to_hbm [thread:$0]  %s143, 128, %s5, [#allocation4]
    $region37: #{runit_forward.2} parent=1 // pred_fallthru
      _
    // Predicated region
    $region38: #{runit_forward.2} parent=1 // pred_check
      _
    $region39: #{runit_forward.2} parent=1 // pred_check_branch
      %147 = sbr.rel (0) target = $region41
    $region40: #{runit_forward.2} parent=1 // pred_region
      %148 = dma.done [#allocation4], 128
    $region41: #{runit_forward.2} parent=1 // pred_fallthru
      _
    %149 = vsyncpa [#allocation4], 1
    %150 = vsyncpa [#allocation5], 1
    %151 = vsyncpa [#allocation7], 1

</llo_original>
